<compile_context>
chip_gen: v7x
topology: tpu7x:2x2x1
jax: 0.10.0
libtpu: 0.0.40
codegen_flags: <defaults>
</compile_context>

<pallas_src>
import functools
from typing import NamedTuple

import numpy as np

import jax
import jax.numpy as jnp
from jax.experimental import pallas as pl
from jax.experimental.pallas import tpu as pltpu

NEG_SLOPE = 0.2
LANES = 128


def _round_up(x, m):
    return (x + m - 1) // m * m


class WaveNetParams(NamedTuple):
    w_stack: jax.Array   # (L, P, P) in compute dtype (f32 or bf16)
    b_stack: jax.Array   # (L, 1, P) float32
    in_dim: int
    num_classes: int


def _mlp_kernel(n_layers, in_dim, x_ref, w_ref, b_ref, o_ref, xpad_ref):
    """Fused padded MLP.

    x_ref:    (tile_b, in_dim)  raw input rows (narrow last dim, no HBM pad)
    w_ref:    (L, P, P)         stacked zero-padded weights, layout (in, out)
    b_ref:    (L, 1, P)         stacked zero-padded biases (f32)
    o_ref:    (tile_b, P) or (tile_b, num_classes) output slab
    xpad_ref: (tile_b, P)       VMEM scratch used to lane-pad the input
    """
    # Lane-pad the input inside VMEM: zeros, then overwrite the first in_dim
    # lanes.  Padded lanes stay exactly 0 through the whole net.
    xpad_ref[...] = jnp.zeros_like(xpad_ref)
    xpad_ref[:, :in_dim] = x_ref[...]
    h = xpad_ref[...]

    cdt = w_ref.dtype  # f32 (exact) or bf16 (fast MXU path)
    for i in range(n_layers):  # statically unrolled; w_ref[i] is a static slice
        h = jnp.dot(h.astype(cdt), w_ref[i],
                    preferred_element_type=jnp.float32) + b_ref[i]
        if i < n_layers - 1:  # LeakyReLU on every FClayer, none on fin_fc
            h = jnp.maximum(h, NEG_SLOPE * h)

    o_ref[...] = h[:, : o_ref.shape[-1]].astype(o_ref.dtype)


def prepare_wavenet_params(weights, biases, *, compute_dtype=jnp.float32):
    """One-time padding/stacking of parameters (hoisted out of the forward).

    weights[i]: (in_i, out_i) -- transposed vs. PyTorch's (out, in).
    biases[i]:  (out_i,)
    """
    n_layers = len(weights)
    in_dim = weights[0].shape[0]
    num_classes = weights[-1].shape[1]
    max_dim = max([in_dim] + [w.shape[1] for w in weights])
    P = _round_up(max_dim, LANES)

    w_stack = np.zeros((n_layers, P, P), np.float32)
    b_stack = np.zeros((n_layers, 1, P), np.float32)
    for i, (w, b) in enumerate(zip(weights, biases)):
        w_stack[i, : w.shape[0], : w.shape[1]] = np.asarray(w, np.float32)
        b_stack[i, 0, : b.shape[0]] = np.asarray(b, np.float32)

    return WaveNetParams(
        jnp.asarray(w_stack, dtype=compute_dtype),
        jnp.asarray(b_stack, dtype=jnp.float32),
        in_dim, num_classes,
    )


def wavenet_forward(x, params: WaveNetParams, *, tile_b=None, narrow_out=None):
    """x: (B, in_dim) float32. Returns (B, num_classes) float32."""
    w_stack, b_stack, in_dim, num_classes = params
    n_layers, P, _ = w_stack.shape
    B = x.shape[0]
    assert x.shape[1] == in_dim

    # ---- batch tiling ----
    B_al = _round_up(B, 8)
    if tile_b is None:
        if B_al <= 512:
            tile_b = B_al  # whole batch in one grid step for small B
        else:
            # >=2 grid steps so v7x's two TensorCores both get batch tiles;
            # cap at 2048 rows (~4.5 MiB VMEM incl. double buffers), which
            # fits the default scoped-VMEM limit on v5e/v6e/v7x.
            tile_b = min(2048, _round_up((B_al + 1) // 2, 8))
    tile_b = _round_up(tile_b, 8)
    B_pad = _round_up(B_al, tile_b)

    xf = x.astype(jnp.float32)
    if B_pad != B:
        xf = jnp.pad(xf, ((0, B_pad - B), (0, 0)))  # only 5 lanes wide -> cheap

    # Lane-dense 128-wide output for small/medium B (unmasked vst); narrow
    # num_classes-wide output for very large B (HBM writeback dominates).
    if narrow_out is None:
        narrow_out = B_pad >= (1 << 17)
    out_w = num_classes if narrow_out else P

    kernel = functools.partial(_mlp_kernel, n_layers, in_dim)

    out = pl.pallas_call(
        kernel,
        out_shape=jax.ShapeDtypeStruct((B_pad, out_w), jnp.float32),
        grid_spec=pltpu.PrefetchScalarGridSpec(
            num_scalar_prefetch=0,
            grid=(B_pad // tile_b,),
            in_specs=[
                pl.BlockSpec((tile_b, in_dim), lambda i: (i, 0)),
                pl.BlockSpec((n_layers, P, P), lambda i: (0, 0, 0)),
                pl.BlockSpec((n_layers, 1, P), lambda i: (0, 0, 0)),
            ],
            out_specs=pl.BlockSpec((tile_b, out_w), lambda i: (i, 0)),
            scratch_shapes=[pltpu.VMEM((tile_b, P), jnp.float32)],
        ),
        compiler_params=pltpu.CompilerParams(
            dimension_semantics=("parallel",),  # shards batch tiles across TCs on v7x
        ),
    )(xf, w_stack, b_stack)

    return out[:B, :num_classes]


def build_wavenet_params(key, planes, nodes, num_classes=3, innodes=5):
    """Deterministic synthetic init matching the PyTorch module's shapes.

    Linear weights: kaiming_normal(mode='fan_out', nonlinearity='leaky_relu')
      -> std = sqrt(2) / sqrt(fan_out)
    Biases: default nn.Linear init, U(-1/sqrt(fan_in), 1/sqrt(fan_in)).
    Stored as (in, out) for the kernel (transpose of PyTorch's (out, in)).
    """
    dims = []
    cur = innodes
    for p, n in zip(planes, nodes):
        for _ in range(p):
            dims.append((cur, n))
            cur = n
    dims.append((cur, num_classes))  # fin_fc, no activation

    weights, biases = [], []
    for (fan_in, fan_out) in dims:
        key, kw, kb = jax.random.split(key, 3)
        std = jnp.sqrt(2.0) / jnp.sqrt(fan_out)
        w = std * jax.random.normal(kw, (fan_in, fan_out), dtype=jnp.float32)
        bound = 1.0 / jnp.sqrt(fan_in)
        b = jax.random.uniform(kb, (fan_out,), minval=-bound, maxval=bound,
                               dtype=jnp.float32)
        weights.append(w)
        biases.append(b)
    return weights, biases


def reference_forward(x, weights, biases):
    """Plain-JAX reference for correctness checking."""
    h = x
    n = len(weights)
    for i, (w, b) in enumerate(zip(weights, biases)):
        h = h @ w + b
        if i < n - 1:
            h = jnp.where(h > 0, h, NEG_SLOPE * h)
    return h


if __name__ == "__main__":
    key = jax.random.PRNGKey(0)

    planes = [2, 2, 2]
    nodes = [32, 32, 32]
    num_classes = 3
    batch = 64

    kp, kx = jax.random.split(key)
    weights, biases = build_wavenet_params(kp, planes, nodes, num_classes)

    # Input: (batch, 5) state vector, as implied by self.innodes = 5.
    x = jax.random.normal(kx, (batch, 5), dtype=jnp.float32)

    ref = reference_forward(x, weights, biases)

    # ---- default path: f32 compute, lane-dense output ----
    params_f32 = prepare_wavenet_params(weights, biases)
    out = jax.block_until_ready(wavenet_forward(x, params_f32))
    assert out.shape == (batch, num_classes)
    assert jnp.allclose(out, ref, atol=1e-5, rtol=1e-5), "f32 mismatch vs reference"

    # ---- narrow-output path (auto-used for very large batches) ----
    out_narrow = jax.block_until_ready(
        wavenet_forward(x, params_f32, narrow_out=True))
    assert jnp.allclose(out_narrow, ref, atol=1e-5, rtol=1e-5), "narrow-out mismatch"

    # ---- bf16 MXU path (fast; f32 accumulation, looser tolerance) ----
    params_bf16 = prepare_wavenet_params(weights, biases,
                                         compute_dtype=jnp.bfloat16)
    out_bf16 = jax.block_until_ready(wavenet_forward(x, params_bf16))
    assert jnp.allclose(out_bf16, ref, atol=5e-2, rtol=5e-2), "bf16 mismatch"

    print("KERNEL_OK")
</pallas_src>

<mosaic_0001>
module attributes {stable_mosaic.version = 11 : i64} {
  func.func @_mlp_kernel(%arg0: i32, %arg1: memref<64x5xf32, #tpu.memory_space<vmem>>, %arg2: memref<7x128x128xf32, #tpu.memory_space<vmem>>, %arg3: memref<7x1x128xf32, #tpu.memory_space<vmem>>, %arg4: memref<64x128xf32, #tpu.memory_space<vmem>>, %arg5: memref<64x128xf32, #tpu.memory_space<vmem>>) attributes {dimension_semantics = [#tpu.dimension_semantics<parallel>], iteration_bounds = array<i64: 1>, scalar_prefetch = 0 : i64, scratch_operands = 1 : i64, tpu.core_type = #tpu.core_type<tc>, window_params = [{transform_indices = @transform_0, window_bounds = array<i64: 64, 5>}, {pipeline_mode = #tpu.pipeline_mode<synchronous>, transform_indices = @transform_1, window_bounds = array<i64: 7, 128, 128>}, {pipeline_mode = #tpu.pipeline_mode<synchronous>, transform_indices = @transform_2, window_bounds = array<i64: 7, 1, 128>}, {transform_indices = @transform_3, window_bounds = array<i64: 64, 128>}]} {
    %cst = arith.constant 0.000000e+00 : f32
    %0 = vector.broadcast %cst : f32 to vector<64x128xf32>
    %c0 = arith.constant 0 : index
    %c0_0 = arith.constant 0 : index
    %1 = vector.load %arg5[%c0, %c0_0] : memref<64x128xf32, #tpu.memory_space<vmem>>, vector<64x128xf32>
    tpu.vector_store %arg5[%c0, %c0_0], %0 {strides = array<i32>} : memref<64x128xf32, #tpu.memory_space<vmem>>, vector<64x128xf32>,
    %c0_1 = arith.constant 0 : index
    %c0_2 = arith.constant 0 : index
    %2 = vector.load %arg1[%c0_1, %c0_2] : memref<64x5xf32, #tpu.memory_space<vmem>>, vector<64x5xf32>
    %c0_3 = arith.constant 0 : index
    %c0_4 = arith.constant 0 : index
    %3 = vector.load %arg5[%c0_3, %c0_4] : memref<64x128xf32, #tpu.memory_space<vmem>>, vector<64x5xf32>
    tpu.vector_store %arg5[%c0_3, %c0_4], %2 {strides = array<i32>} : memref<64x128xf32, #tpu.memory_space<vmem>>, vector<64x5xf32>,
    %c0_5 = arith.constant 0 : index
    %c0_6 = arith.constant 0 : index
    %4 = vector.load %arg5[%c0_5, %c0_6] : memref<64x128xf32, #tpu.memory_space<vmem>>, vector<64x128xf32>
    %c0_7 = arith.constant 0 : index
    %c0_8 = arith.constant 0 : index
    %c0_9 = arith.constant 0 : index
    %5 = vector.load %arg2[%c0_7, %c0_8, %c0_9] : memref<7x128x128xf32, #tpu.memory_space<vmem>>, vector<1x128x128xf32>
    %6 = vector.shape_cast %5 : vector<1x128x128xf32> to vector<128x128xf32>
    %cst_10 = arith.constant dense<0.000000e+00> : vector<64x128xf32>
    %7 = tpu.matmul %4, %6, %cst_10 {dimension_numbers = #tpu.dot_dimension_numbers<[1], [0], [0], [1], [0, 0, 1, 1], [], []>} : vector<64x128xf32>, vector<128x128xf32>, vector<64x128xf32> -> vector<64x128xf32>
    %c0_11 = arith.constant 0 : index
    %c0_12 = arith.constant 0 : index
    %c0_13 = arith.constant 0 : index
    %8 = vector.load %arg3[%c0_11, %c0_12, %c0_13] : memref<7x1x128xf32, #tpu.memory_space<vmem>>, vector<1x1x128xf32>
    %9 = vector.shape_cast %8 : vector<1x1x128xf32> to vector<1x128xf32>
    %10 = vector.broadcast %9 : vector<1x128xf32> to vector<64x128xf32>
    %11 = arith.addf %7, %10 : vector<64x128xf32>
    %cst_14 = arith.constant 2.000000e-01 : f32
    %12 = vector.broadcast %cst_14 : f32 to vector<64x128xf32>
    %13 = arith.mulf %12, %11 : vector<64x128xf32>
    %14 = arith.maximumf %11, %13 : vector<64x128xf32>
    %c1 = arith.constant 1 : index
    %c0_15 = arith.constant 0 : index
    %c0_16 = arith.constant 0 : index
    %15 = vector.load %arg2[%c1, %c0_15, %c0_16] : memref<7x128x128xf32, #tpu.memory_space<vmem>>, vector<1x128x128xf32>
    %16 = vector.shape_cast %15 : vector<1x128x128xf32> to vector<128x128xf32>
    %cst_17 = arith.constant dense<0.000000e+00> : vector<64x128xf32>
    %17 = tpu.matmul %14, %16, %cst_17 {dimension_numbers = #tpu.dot_dimension_numbers<[1], [0], [0], [1], [0, 0, 1, 1], [], []>} : vector<64x128xf32>, vector<128x128xf32>, vector<64x128xf32> -> vector<64x128xf32>
    %c1_18 = arith.constant 1 : index
    %c0_19 = arith.constant 0 : index
    %c0_20 = arith.constant 0 : index
    %18 = vector.load %arg3[%c1_18, %c0_19, %c0_20] : memref<7x1x128xf32, #tpu.memory_space<vmem>>, vector<1x1x128xf32>
    %19 = vector.shape_cast %18 : vector<1x1x128xf32> to vector<1x128xf32>
    %20 = vector.broadcast %19 : vector<1x128xf32> to vector<64x128xf32>
    %21 = arith.addf %17, %20 : vector<64x128xf32>
    %cst_21 = arith.constant 2.000000e-01 : f32
    %22 = vector.broadcast %cst_21 : f32 to vector<64x128xf32>
    %23 = arith.mulf %22, %21 : vector<64x128xf32>
    %24 = arith.maximumf %21, %23 : vector<64x128xf32>
    %c2 = arith.constant 2 : index
    %c0_22 = arith.constant 0 : index
    %c0_23 = arith.constant 0 : index
    %25 = vector.load %arg2[%c2, %c0_22, %c0_23] : memref<7x128x128xf32, #tpu.memory_space<vmem>>, vector<1x128x128xf32>
    %26 = vector.shape_cast %25 : vector<1x128x128xf32> to vector<128x128xf32>
    %cst_24 = arith.constant dense<0.000000e+00> : vector<64x128xf32>
    %27 = tpu.matmul %24, %26, %cst_24 {dimension_numbers = #tpu.dot_dimension_numbers<[1], [0], [0], [1], [0, 0, 1, 1], [], []>} : vector<64x128xf32>, vector<128x128xf32>, vector<64x128xf32> -> vector<64x128xf32>
    %c2_25 = arith.constant 2 : index
    %c0_26 = arith.constant 0 : index
    %c0_27 = arith.constant 0 : index
    %28 = vector.load %arg3[%c2_25, %c0_26, %c0_27] : memref<7x1x128xf32, #tpu.memory_space<vmem>>, vector<1x1x128xf32>
    %29 = vector.shape_cast %28 : vector<1x1x128xf32> to vector<1x128xf32>
    %30 = vector.broadcast %29 : vector<1x128xf32> to vector<64x128xf32>
    %31 = arith.addf %27, %30 : vector<64x128xf32>
    %cst_28 = arith.constant 2.000000e-01 : f32
    %32 = vector.broadcast %cst_28 : f32 to vector<64x128xf32>
    %33 = arith.mulf %32, %31 : vector<64x128xf32>
    %34 = arith.maximumf %31, %33 : vector<64x128xf32>
    %c3 = arith.constant 3 : index
    %c0_29 = arith.constant 0 : index
    %c0_30 = arith.constant 0 : index
    %35 = vector.load %arg2[%c3, %c0_29, %c0_30] : memref<7x128x128xf32, #tpu.memory_space<vmem>>, vector<1x128x128xf32>
    %36 = vector.shape_cast %35 : vector<1x128x128xf32> to vector<128x128xf32>
    %cst_31 = arith.constant dense<0.000000e+00> : vector<64x128xf32>
    %37 = tpu.matmul %34, %36, %cst_31 {dimension_numbers = #tpu.dot_dimension_numbers<[1], [0], [0], [1], [0, 0, 1, 1], [], []>} : vector<64x128xf32>, vector<128x128xf32>, vector<64x128xf32> -> vector<64x128xf32>
    %c3_32 = arith.constant 3 : index
    %c0_33 = arith.constant 0 : index
    %c0_34 = arith.constant 0 : index
    %38 = vector.load %arg3[%c3_32, %c0_33, %c0_34] : memref<7x1x128xf32, #tpu.memory_space<vmem>>, vector<1x1x128xf32>
    %39 = vector.shape_cast %38 : vector<1x1x128xf32> to vector<1x128xf32>
    %40 = vector.broadcast %39 : vector<1x128xf32> to vector<64x128xf32>
    %41 = arith.addf %37, %40 : vector<64x128xf32>
    %cst_35 = arith.constant 2.000000e-01 : f32
    %42 = vector.broadcast %cst_35 : f32 to vector<64x128xf32>
    %43 = arith.mulf %42, %41 : vector<64x128xf32>
    %44 = arith.maximumf %41, %43 : vector<64x128xf32>
    %c4 = arith.constant 4 : index
    %c0_36 = arith.constant 0 : index
    %c0_37 = arith.constant 0 : index
    %45 = vector.load %arg2[%c4, %c0_36, %c0_37] : memref<7x128x128xf32, #tpu.memory_space<vmem>>, vector<1x128x128xf32>
    %46 = vector.shape_cast %45 : vector<1x128x128xf32> to vector<128x128xf32>
    %cst_38 = arith.constant dense<0.000000e+00> : vector<64x128xf32>
    %47 = tpu.matmul %44, %46, %cst_38 {dimension_numbers = #tpu.dot_dimension_numbers<[1], [0], [0], [1], [0, 0, 1, 1], [], []>} : vector<64x128xf32>, vector<128x128xf32>, vector<64x128xf32> -> vector<64x128xf32>
    %c4_39 = arith.constant 4 : index
    %c0_40 = arith.constant 0 : index
    %c0_41 = arith.constant 0 : index
    %48 = vector.load %arg3[%c4_39, %c0_40, %c0_41] : memref<7x1x128xf32, #tpu.memory_space<vmem>>, vector<1x1x128xf32>
    %49 = vector.shape_cast %48 : vector<1x1x128xf32> to vector<1x128xf32>
    %50 = vector.broadcast %49 : vector<1x128xf32> to vector<64x128xf32>
    %51 = arith.addf %47, %50 : vector<64x128xf32>
    %cst_42 = arith.constant 2.000000e-01 : f32
    %52 = vector.broadcast %cst_42 : f32 to vector<64x128xf32>
    %53 = arith.mulf %52, %51 : vector<64x128xf32>
    %54 = arith.maximumf %51, %53 : vector<64x128xf32>
    %c5 = arith.constant 5 : index
    %c0_43 = arith.constant 0 : index
    %c0_44 = arith.constant 0 : index
    %55 = vector.load %arg2[%c5, %c0_43, %c0_44] : memref<7x128x128xf32, #tpu.memory_space<vmem>>, vector<1x128x128xf32>
    %56 = vector.shape_cast %55 : vector<1x128x128xf32> to vector<128x128xf32>
    %cst_45 = arith.constant dense<0.000000e+00> : vector<64x128xf32>
    %57 = tpu.matmul %54, %56, %cst_45 {dimension_numbers = #tpu.dot_dimension_numbers<[1], [0], [0], [1], [0, 0, 1, 1], [], []>} : vector<64x128xf32>, vector<128x128xf32>, vector<64x128xf32> -> vector<64x128xf32>
    %c5_46 = arith.constant 5 : index
    %c0_47 = arith.constant 0 : index
    %c0_48 = arith.constant 0 : index
    %58 = vector.load %arg3[%c5_46, %c0_47, %c0_48] : memref<7x1x128xf32, #tpu.memory_space<vmem>>, vector<1x1x128xf32>
    %59 = vector.shape_cast %58 : vector<1x1x128xf32> to vector<1x128xf32>
    %60 = vector.broadcast %59 : vector<1x128xf32> to vector<64x128xf32>
    %61 = arith.addf %57, %60 : vector<64x128xf32>
    %cst_49 = arith.constant 2.000000e-01 : f32
    %62 = vector.broadcast %cst_49 : f32 to vector<64x128xf32>
    %63 = arith.mulf %62, %61 : vector<64x128xf32>
    %64 = arith.maximumf %61, %63 : vector<64x128xf32>
    %c6 = arith.constant 6 : index
    %c0_50 = arith.constant 0 : index
    %c0_51 = arith.constant 0 : index
    %65 = vector.load %arg2[%c6, %c0_50, %c0_51] : memref<7x128x128xf32, #tpu.memory_space<vmem>>, vector<1x128x128xf32>
    %66 = vector.shape_cast %65 : vector<1x128x128xf32> to vector<128x128xf32>
    %cst_52 = arith.constant dense<0.000000e+00> : vector<64x128xf32>
    %67 = tpu.matmul %64, %66, %cst_52 {dimension_numbers = #tpu.dot_dimension_numbers<[1], [0], [0], [1], [0, 0, 1, 1], [], []>} : vector<64x128xf32>, vector<128x128xf32>, vector<64x128xf32> -> vector<64x128xf32>
    %c6_53 = arith.constant 6 : index
    %c0_54 = arith.constant 0 : index
    %c0_55 = arith.constant 0 : index
    %68 = vector.load %arg3[%c6_53, %c0_54, %c0_55] : memref<7x1x128xf32, #tpu.memory_space<vmem>>, vector<1x1x128xf32>
    %69 = vector.shape_cast %68 : vector<1x1x128xf32> to vector<1x128xf32>
    %70 = vector.broadcast %69 : vector<1x128xf32> to vector<64x128xf32>
    %71 = arith.addf %67, %70 : vector<64x128xf32>
    %c0_56 = arith.constant 0 : index
    %c0_57 = arith.constant 0 : index
    %72 = vector.load %arg4[%c0_56, %c0_57] : memref<64x128xf32, #tpu.memory_space<vmem>>, vector<64x128xf32>
    tpu.vector_store %arg4[%c0_56, %c0_57], %71 {strides = array<i32>} : memref<64x128xf32, #tpu.memory_space<vmem>>, vector<64x128xf32>,
    return
  }
  func.func @transform_0(%arg0: i32) -> (i32, i32) {
    %c0_i32 = arith.constant 0 : i32
    %c0_i32_0 = arith.constant 0 : i32
    return %arg0, %c0_i32 : i32, i32
  }
  func.func @transform_1(%arg0: i32) -> (i32, i32, i32) {
    %c0_i32 = arith.constant 0 : i32
    %c0_i32_0 = arith.constant 0 : i32
    %c0_i32_1 = arith.constant 0 : i32
    %c0_i32_2 = arith.constant 0 : i32
    return %c0_i32, %c0_i32_0, %c0_i32_1 : i32, i32, i32
  }
  func.func @transform_2(%arg0: i32) -> (i32, i32, i32) {
    %c0_i32 = arith.constant 0 : i32
    %c0_i32_0 = arith.constant 0 : i32
    %c0_i32_1 = arith.constant 0 : i32
    %c0_i32_2 = arith.constant 0 : i32
    return %c0_i32, %c0_i32_0, %c0_i32_1 : i32, i32, i32
  }
  func.func @transform_3(%arg0: i32) -> (i32, i32) {
    %c0_i32 = arith.constant 0 : i32
    %c0_i32_0 = arith.constant 0 : i32
    return %arg0, %c0_i32 : i32, i32
  }
}

</mosaic_0001>

<llo_original>
// kernel: tpu_custom_call.1
$region0: #{tpu_custom_call.1}
  #allocation0 [shape = 'u32[]', space=smem, size = 0x4, offset = 0x4, fixed_abs, tag = 'smem constant byte address 0x4 - core index']
  #allocation1 [shape = 'u32[144,128]{1,0:T(1,128)}', space=vmem, size = 0x12000, scoped, tag = 'internal scratch']
  #allocation2 [shape = 'f32[64,128]{1,0:T(8,128)}', space=vmem, size = 0x8000, scoped, tag = 'scratch operand']
  %s0 = inlined_call_operand.vmem [shape: f32[64,5], index: 0, kind: input, shape index: {}]
  %s1 = inlined_call_operand.hbm [shape: f32[7,128,128], index: 1, kind: input, shape index: {}]
  %s2 = inlined_call_operand.vmem [shape: f32[7,1,128], index: 2, kind: input, shape index: {}]
  %s3 = inlined_call_operand.hbm [shape: f32[64,128], index: 3, kind: output, shape index: {}]
  %s4 = sld [smem:[#allocation0]]
  $region26: #{tpu_custom_call.1} parent=0
    _
  %s6 = ssub.s32 1, %s4
  %s7 = scalar_select 0, %s6, %s4
  $region1: #{tpu_custom_call.1} parent=0
    #allocation3 [shape = 'u8[458752]{0}', space=vmem, size = 0x70000, scoped, tag = 'input window, operand 1, single buffered']
    #allocation4 [shape = 's32[1]{0}', space=sflag, size = 0x4, scoped, tag = 'scoped memory for tpu_custom_call.1']
    #allocation5 [shape = 's32[1]{0}', space=sflag, size = 0x4, scoped, tag = 'scoped memory for tpu_custom_call.1']
    #allocation6 [shape = 'u8[32768]{0}', space=vmem, size = 0x8000, scoped, tag = 'output window, operand 0, single buffered']
    %8 = vsyncpa [#allocation4], 0
    %9 = vsyncpa [#allocation5], 0
    // Predicated region
    $region2: #{tpu_custom_call.1} parent=1 // pred_check
      _
    $region3: #{tpu_custom_call.1} parent=1 // pred_check_branch
      %11 = sbr.rel (0) target = $region5
    $region4: #{tpu_custom_call.1} parent=1 // pred_region
      _
    $region5: #{tpu_custom_call.1} parent=1 // pred_fallthru
      _
    // Predicated region
    $region6: #{tpu_custom_call.1} parent=1 // pred_check
      _
    $region7: #{tpu_custom_call.1} parent=1 // pred_check_branch
      %13 = sbr.rel (0) target = $region9
    $region8: #{tpu_custom_call.1} parent=1 // pred_region
      %s15 = ssub.s32 14336, 14336
      %16 = vsyncadd [#allocation4], %s15
      %s17 = sshll.u32 [#allocation3], 4
      %s18 = int_to_ptr.vmem [resolvable:$true] %s17
      %23 = dma.hbm_to_vmem [thread:$0]  %s1, 14336, %s18, [#allocation4], 128, 128, 8
    $region9: #{tpu_custom_call.1} parent=1 // pred_fallthru
      _
    // Predicated region
    $region10: #{tpu_custom_call.1} parent=1 // pred_check
      _
    $region11: #{tpu_custom_call.1} parent=1 // pred_check_branch
      %25 = sbr.rel (0) target = $region13
    $region12: #{tpu_custom_call.1} parent=1 // pred_region
      _
    $region13: #{tpu_custom_call.1} parent=1 // pred_fallthru
      _
    // Predicated region
    $region14: #{tpu_custom_call.1} parent=1 // pred_check
      _
    $region15: #{tpu_custom_call.1} parent=1 // pred_check_branch
      %27 = sbr.rel (0) target = $region17
    $region16: #{tpu_custom_call.1} parent=1 // pred_region
      %28 = dma.done [#allocation4], 14336
    $region17: #{tpu_custom_call.1} parent=1 // pred_fallthru
      _
    %29 = vst [vmem:[#allocation2] sm:$0xff] 0.0
    %30 = vst [vmem:[#allocation2 + $0x8] sm:$0xff] 0.0
    %31 = vst [vmem:[#allocation2 + $0x10] sm:$0xff] 0.0
    %32 = vst [vmem:[#allocation2 + $0x18] sm:$0xff] 0.0
    %33 = vst [vmem:[#allocation2 + $0x20] sm:$0xff] 0.0
    %34 = vst [vmem:[#allocation2 + $0x28] sm:$0xff] 0.0
    %35 = vst [vmem:[#allocation2 + $0x30] sm:$0xff] 0.0
    %36 = vst [vmem:[#allocation2 + $0x38] sm:$0xff] 0.0
    %v37 = vld [vmem:[%s0] sm:$0xff]
    %v38 = vld [vmem:[%s0 + $0x8] sm:$0xff]
    %v39 = vld [vmem:[%s0 + $0x10] sm:$0xff]
    %v40 = vld [vmem:[%s0 + $0x18] sm:$0xff]
    %v41 = vld [vmem:[%s0 + $0x20] sm:$0xff]
    %v42 = vld [vmem:[%s0 + $0x28] sm:$0xff]
    %v43 = vld [vmem:[%s0 + $0x30] sm:$0xff]
    %v44 = vld [vmem:[%s0 + $0x38] sm:$0xff]
    %vm45 = vcmask 39936
    %46 = vst.msk [vmem:[#allocation2] sm:$0xff] %vm45, %v37
    %47 = vst.msk [vmem:[#allocation2 + $0x8] sm:$0xff] %vm45, %v38
    %48 = vst.msk [vmem:[#allocation2 + $0x10] sm:$0xff] %vm45, %v39
    %49 = vst.msk [vmem:[#allocation2 + $0x18] sm:$0xff] %vm45, %v40
    %50 = vst.msk [vmem:[#allocation2 + $0x20] sm:$0xff] %vm45, %v41
    %51 = vst.msk [vmem:[#allocation2 + $0x28] sm:$0xff] %vm45, %v42
    %52 = vst.msk [vmem:[#allocation2 + $0x30] sm:$0xff] %vm45, %v43
    %53 = vst.msk [vmem:[#allocation2 + $0x38] sm:$0xff] %vm45, %v44
    %v54 = vld [vmem:[#allocation2] sm:$0xff]
    %v55 = vld [vmem:[#allocation2 + $0x8] sm:$0xff]
    %v56 = vld [vmem:[#allocation2 + $0x10] sm:$0xff]
    %v57 = vld [vmem:[#allocation2 + $0x18] sm:$0xff]
    %v58 = vld [vmem:[#allocation2 + $0x20] sm:$0xff]
    %v59 = vld [vmem:[#allocation2 + $0x28] sm:$0xff]
    %v60 = vld [vmem:[#allocation2 + $0x30] sm:$0xff]
    %v61 = vld [vmem:[#allocation2 + $0x38] sm:$0xff]
    %v62 = vld [vmem:[#allocation3] sm:$0xff]
    %v63 = vld [vmem:[#allocation3 + $0x8] sm:$0xff]
    %v64 = vld [vmem:[#allocation3 + $0x10] sm:$0xff]
    %v65 = vld [vmem:[#allocation3 + $0x18] sm:$0xff]
    %v66 = vld [vmem:[#allocation3 + $0x20] sm:$0xff]
    %v67 = vld [vmem:[#allocation3 + $0x28] sm:$0xff]
    %v68 = vld [vmem:[#allocation3 + $0x30] sm:$0xff]
    %v69 = vld [vmem:[#allocation3 + $0x38] sm:$0xff]
    %v70 = vld [vmem:[#allocation3 + $0x40] sm:$0xff]
    %v71 = vld [vmem:[#allocation3 + $0x48] sm:$0xff]
    %v72 = vld [vmem:[#allocation3 + $0x50] sm:$0xff]
    %v73 = vld [vmem:[#allocation3 + $0x58] sm:$0xff]
    %v74 = vld [vmem:[#allocation3 + $0x60] sm:$0xff]
    %v75 = vld [vmem:[#allocation3 + $0x68] sm:$0xff]
    %v76 = vld [vmem:[#allocation3 + $0x70] sm:$0xff]
    %v77 = vld [vmem:[#allocation3 + $0x78] sm:$0xff]
    %v78 = vld [vmem:[%s2] sm:$0x1]
    %v80 = vlaneseq
    %v81 = vshrl.u32 %v80, 7
    %v82 = vsub.s32 0, %v81
    %v83 = vrot.slane %v78, %v82
    %85 = vmatprep.subr.mxu0 0.0
    %86 = vmatpush1.msra.mxu0 %v62
    %87 = vmatprep.subr.mxu0 0.0
    %88 = vmatpush1.msra.mxu0 %v63
    %89 = vmatprep.subr.mxu0 0.0
    %90 = vmatpush1.msra.mxu0 %v64
    %91 = vmatprep.subr.mxu0 0.0
    %92 = vmatpush1.msra.mxu0 %v65
    %93 = vmatprep.subr.mxu0 0.0
    %94 = vmatpush1.msra.mxu0 %v66
    %95 = vmatprep.subr.mxu0 0.0
    %96 = vmatpush1.msra.mxu0 %v67
    %97 = vmatprep.subr.mxu0 0.0
    %98 = vmatpush1.msra.mxu0 %v68
    %99 = vmatprep.subr.mxu0 0.0
    %100 = vmatpush1.msra.mxu0 %v69
    %101 = vmatprep.subr.mxu0 0.0
    %102 = vmatpush1.msra.mxu0 %v70
    %103 = vmatprep.subr.mxu0 0.0
    %104 = vmatpush1.msra.mxu0 %v71
    %105 = vmatprep.subr.mxu0 0.0
    %106 = vmatpush1.msra.mxu0 %v72
    %107 = vmatprep.subr.mxu0 0.0
    %108 = vmatpush1.msra.mxu0 %v73
    %109 = vmatprep.subr.mxu0 0.0
    %110 = vmatpush1.msra.mxu0 %v74
    %111 = vmatprep.subr.mxu0 0.0
    %112 = vmatpush1.msra.mxu0 %v75
    %113 = vmatprep.subr.mxu0 0.0
    %114 = vmatpush1.msra.mxu0 %v76
    %115 = vmatprep.subr.mxu0 0.0
    %116 = vmatpush1.msra.mxu0 %v77
    %117 = vmatprep.subr.mxu0 0.0
    %118 = vmatpush1.msra.mxu0 0.0
    %119 = vmatprep.subr.mxu0 0.0
    %120 = vmatpush1.msra.mxu0 0.0
    %121 = vmatprep.subr.mxu0 0.0
    %122 = vmatpush1.msra.mxu0 0.0
    %123 = vmatprep.subr.mxu0 0.0
    %124 = vmatpush1.msra.mxu0 0.0
    %125 = vmatprep.subr.mxu0 0.0
    %126 = vmatpush1.msra.mxu0 0.0
    %127 = vmatprep.subr.mxu0 0.0
    %128 = vmatpush1.msra.mxu0 0.0
    %129 = vmatprep.subr.mxu0 0.0
    %130 = vmatpush1.msra.mxu0 0.0
    %131 = vmatprep.subr.mxu0 0.0
    %132 = vmatpush1.msra.mxu0 0.0
    %133 = vmatprep.subr.mxu0 0.0
    %134 = vmatpush1.msra.mxu0 0.0
    %135 = vmatprep.subr.mxu0 0.0
    %136 = vmatpush1.msra.mxu0 0.0
    %137 = vmatprep.subr.mxu0 0.0
    %138 = vmatpush1.msra.mxu0 0.0
    %139 = vmatprep.subr.mxu0 0.0
    %140 = vmatpush1.msra.mxu0 0.0
    %141 = vmatprep.subr.mxu0 0.0
    %142 = vmatpush1.msra.mxu0 0.0
    %143 = vmatprep.subr.mxu0 0.0
    %144 = vmatpush1.msra.mxu0 0.0
    %145 = vmatprep.subr.mxu0 0.0
    %146 = vmatpush1.msra.mxu0 0.0
    %147 = vmatprep.subr.mxu0 0.0
    %148 = vmatpush1.msra.mxu0 0.0
    %149 = vmatprep.mubr.f32.mxu0 0.0
    %150 = vmatmul.mubr.f32.gmra.mrb[0].mxu0 %v54
    %v151 = vpop.f32.mrb[0].mxu0
    %v152 = vadd.f32 %v83, %v151
    %v153 = vpop.f32.mrb[0].mxu0
    %154 = vmatprep.mubr.f32.mxu0 0.0
    %155 = vmatmul.mubr.f32.gmra.mrb[0].mxu0 %v55
    %v156 = vpop.f32.mrb[0].mxu0
    %v157 = vadd.f32 %v83, %v156
    %v158 = vpop.f32.mrb[0].mxu0
    %159 = vmatprep.mubr.f32.mxu0 0.0
    %160 = vmatmul.mubr.f32.gmra.mrb[0].mxu0 %v56
    %v161 = vpop.f32.mrb[0].mxu0
    %v162 = vadd.f32 %v83, %v161
    %v163 = vpop.f32.mrb[0].mxu0
    %164 = vmatprep.mubr.f32.mxu0 0.0
    %165 = vmatmul.mubr.f32.gmra.mrb[0].mxu0 %v57
    %v166 = vpop.f32.mrb[0].mxu0
    %v167 = vadd.f32 %v83, %v166
    %v168 = vpop.f32.mrb[0].mxu0
    %169 = vmatprep.mubr.f32.mxu0 0.0
    %170 = vmatmul.mubr.f32.gmra.mrb[0].mxu0 %v58
    %v171 = vpop.f32.mrb[0].mxu0
    %v172 = vadd.f32 %v83, %v171
    %v173 = vpop.f32.mrb[0].mxu0
    %174 = vmatprep.mubr.f32.mxu0 0.0
    %175 = vmatmul.mubr.f32.gmra.mrb[0].mxu0 %v59
    %v176 = vpop.f32.mrb[0].mxu0
    %v177 = vadd.f32 %v83, %v176
    %v178 = vpop.f32.mrb[0].mxu0
    %179 = vmatprep.mubr.f32.mxu0 0.0
    %180 = vmatmul.mubr.f32.gmra.mrb[0].mxu0 %v60
    %v181 = vpop.f32.mrb[0].mxu0
    %v182 = vadd.f32 %v83, %v181
    %v183 = vpop.f32.mrb[0].mxu0
    %184 = vmatprep.mubr.f32.mxu0 0.0
    %185 = vmatmul.mubr.f32.gmra.mrb[0].mxu0 %v61
    %v186 = vpop.f32.mrb[0].mxu0
    %v187 = vadd.f32 %v83, %v186
    %v188 = vpop.f32.mrb[0].mxu0
    %189 = vdwg.mxu0
    %v190 = vmul.f32 %v152, 0.2
    %v191 = vmul.f32 %v157, 0.2
    %v192 = vmul.f32 %v162, 0.2
    %v193 = vmul.f32 %v167, 0.2
    %v194 = vmul.f32 %v172, 0.2
    %v195 = vmul.f32 %v177, 0.2
    %v196 = vmul.f32 %v182, 0.2
    %v197 = vmul.f32 %v187, 0.2
    %v198 = vmax.f32 %v152, %v190
    %v199 = vmax.f32 %v157, %v191
    %v200 = vmax.f32 %v162, %v192
    %v201 = vmax.f32 %v167, %v193
    %v202 = vmax.f32 %v172, %v194
    %v203 = vmax.f32 %v177, %v195
    %v204 = vmax.f32 %v182, %v196
    %v205 = vmax.f32 %v187, %v197
    %s206 = scalar_lea.vmem [#allocation3], 128
    %v207 = vld [vmem:[%s206] sm:$0xff]
    %v208 = vld [vmem:[%s206 + $0x8] sm:$0xff]
    %v209 = vld [vmem:[%s206 + $0x10] sm:$0xff]
    %v210 = vld [vmem:[%s206 + $0x18] sm:$0xff]
    %v211 = vld [vmem:[%s206 + $0x20] sm:$0xff]
    %v212 = vld [vmem:[%s206 + $0x28] sm:$0xff]
    %v213 = vld [vmem:[%s206 + $0x30] sm:$0xff]
    %v214 = vld [vmem:[%s206 + $0x38] sm:$0xff]
    %v215 = vld [vmem:[%s206 + $0x40] sm:$0xff]
    %v216 = vld [vmem:[%s206 + $0x48] sm:$0xff]
    %v217 = vld [vmem:[%s206 + $0x50] sm:$0xff]
    %v218 = vld [vmem:[%s206 + $0x58] sm:$0xff]
    %v219 = vld [vmem:[%s206 + $0x60] sm:$0xff]
    %v220 = vld [vmem:[%s206 + $0x68] sm:$0xff]
    %v221 = vld [vmem:[%s206 + $0x70] sm:$0xff]
    %v222 = vld [vmem:[%s206 + $0x78] sm:$0xff]
    %s223 = scalar_lea.vmem %s2, 1
    %v224 = vld [vmem:[%s223] sm:$0x1]
    %v226 = vlaneseq
    %v227 = vshrl.u32 %v226, 7
    %v228 = vsub.s32 0, %v227
    %v229 = vrot.slane %v224, %v228
    %231 = vmatprep.subr.mxu0 0.0
    %232 = vmatpush1.msra.mxu0 %v207
    %233 = vmatprep.subr.mxu0 0.0
    %234 = vmatpush1.msra.mxu0 %v208
    %235 = vmatprep.subr.mxu0 0.0
    %236 = vmatpush1.msra.mxu0 %v209
    %237 = vmatprep.subr.mxu0 0.0
    %238 = vmatpush1.msra.mxu0 %v210
    %239 = vmatprep.subr.mxu0 0.0
    %240 = vmatpush1.msra.mxu0 %v211
    %241 = vmatprep.subr.mxu0 0.0
    %242 = vmatpush1.msra.mxu0 %v212
    %243 = vmatprep.subr.mxu0 0.0
    %244 = vmatpush1.msra.mxu0 %v213
    %245 = vmatprep.subr.mxu0 0.0
    %246 = vmatpush1.msra.mxu0 %v214
    %247 = vmatprep.subr.mxu0 0.0
    %248 = vmatpush1.msra.mxu0 %v215
    %249 = vmatprep.subr.mxu0 0.0
    %250 = vmatpush1.msra.mxu0 %v216
    %251 = vmatprep.subr.mxu0 0.0
    %252 = vmatpush1.msra.mxu0 %v217
    %253 = vmatprep.subr.mxu0 0.0
    %254 = vmatpush1.msra.mxu0 %v218
    %255 = vmatprep.subr.mxu0 0.0
    %256 = vmatpush1.msra.mxu0 %v219
    %257 = vmatprep.subr.mxu0 0.0
    %258 = vmatpush1.msra.mxu0 %v220
    %259 = vmatprep.subr.mxu0 0.0
    %260 = vmatpush1.msra.mxu0 %v221
    %261 = vmatprep.subr.mxu0 0.0
    %262 = vmatpush1.msra.mxu0 %v222
    %263 = vmatprep.subr.mxu0 0.0
    %264 = vmatpush1.msra.mxu0 0.0
    %265 = vmatprep.subr.mxu0 0.0
    %266 = vmatpush1.msra.mxu0 0.0
    %267 = vmatprep.subr.mxu0 0.0
    %268 = vmatpush1.msra.mxu0 0.0
    %269 = vmatprep.subr.mxu0 0.0
    %270 = vmatpush1.msra.mxu0 0.0
    %271 = vmatprep.subr.mxu0 0.0
    %272 = vmatpush1.msra.mxu0 0.0
    %273 = vmatprep.subr.mxu0 0.0
    %274 = vmatpush1.msra.mxu0 0.0
    %275 = vmatprep.subr.mxu0 0.0
    %276 = vmatpush1.msra.mxu0 0.0
    %277 = vmatprep.subr.mxu0 0.0
    %278 = vmatpush1.msra.mxu0 0.0
    %279 = vmatprep.subr.mxu0 0.0
    %280 = vmatpush1.msra.mxu0 0.0
    %281 = vmatprep.subr.mxu0 0.0
    %282 = vmatpush1.msra.mxu0 0.0
    %283 = vmatprep.subr.mxu0 0.0
    %284 = vmatpush1.msra.mxu0 0.0
    %285 = vmatprep.subr.mxu0 0.0
    %286 = vmatpush1.msra.mxu0 0.0
    %287 = vmatprep.subr.mxu0 0.0
    %288 = vmatpush1.msra.mxu0 0.0
    %289 = vmatprep.subr.mxu0 0.0
    %290 = vmatpush1.msra.mxu0 0.0
    %291 = vmatprep.subr.mxu0 0.0
    %292 = vmatpush1.msra.mxu0 0.0
    %293 = vmatprep.subr.mxu0 0.0
    %294 = vmatpush1.msra.mxu0 0.0
    %295 = vmatprep.mubr.f32.mxu0 0.0
    %296 = vmatmul.mubr.f32.gmra.mrb[0].mxu0 %v198
    %v297 = vpop.f32.mrb[0].mxu0
    %v298 = vadd.f32 %v229, %v297
    %v299 = vpop.f32.mrb[0].mxu0
    %300 = vmatprep.mubr.f32.mxu0 0.0
    %301 = vmatmul.mubr.f32.gmra.mrb[0].mxu0 %v199
    %v302 = vpop.f32.mrb[0].mxu0
    %v303 = vadd.f32 %v229, %v302
    %v304 = vpop.f32.mrb[0].mxu0
    %305 = vmatprep.mubr.f32.mxu0 0.0
    %306 = vmatmul.mubr.f32.gmra.mrb[0].mxu0 %v200
    %v307 = vpop.f32.mrb[0].mxu0
    %v308 = vadd.f32 %v229, %v307
    %v309 = vpop.f32.mrb[0].mxu0
    %310 = vmatprep.mubr.f32.mxu0 0.0
    %311 = vmatmul.mubr.f32.gmra.mrb[0].mxu0 %v201
    %v312 = vpop.f32.mrb[0].mxu0
    %v313 = vadd.f32 %v229, %v312
    %v314 = vpop.f32.mrb[0].mxu0
    %315 = vmatprep.mubr.f32.mxu0 0.0
    %316 = vmatmul.mubr.f32.gmra.mrb[0].mxu0 %v202
    %v317 = vpop.f32.mrb[0].mxu0
    %v318 = vadd.f32 %v229, %v317
    %v319 = vpop.f32.mrb[0].mxu0
    %320 = vmatprep.mubr.f32.mxu0 0.0
    %321 = vmatmul.mubr.f32.gmra.mrb[0].mxu0 %v203
    %v322 = vpop.f32.mrb[0].mxu0
    %v323 = vadd.f32 %v229, %v322
    %v324 = vpop.f32.mrb[0].mxu0
    %325 = vmatprep.mubr.f32.mxu0 0.0
    %326 = vmatmul.mubr.f32.gmra.mrb[0].mxu0 %v204
    %v327 = vpop.f32.mrb[0].mxu0
    %v328 = vadd.f32 %v229, %v327
    %v329 = vpop.f32.mrb[0].mxu0
    %330 = vmatprep.mubr.f32.mxu0 0.0
    %331 = vmatmul.mubr.f32.gmra.mrb[0].mxu0 %v205
    %v332 = vpop.f32.mrb[0].mxu0
    %v333 = vadd.f32 %v229, %v332
    %v334 = vpop.f32.mrb[0].mxu0
    %335 = vdwg.mxu0
    %v336 = vmul.f32 %v298, 0.2
    %v337 = vmul.f32 %v303, 0.2
    %v338 = vmul.f32 %v308, 0.2
    %v339 = vmul.f32 %v313, 0.2
    %v340 = vmul.f32 %v318, 0.2
    %v341 = vmul.f32 %v323, 0.2
    %v342 = vmul.f32 %v328, 0.2
    %v343 = vmul.f32 %v333, 0.2
    %v344 = vmax.f32 %v298, %v336
    %v345 = vmax.f32 %v303, %v337
    %v346 = vmax.f32 %v308, %v338
    %v347 = vmax.f32 %v313, %v339
    %v348 = vmax.f32 %v318, %v340
    %v349 = vmax.f32 %v323, %v341
    %v350 = vmax.f32 %v328, %v342
    %v351 = vmax.f32 %v333, %v343
    %s352 = scalar_lea.vmem [#allocation3], 256
    %v353 = vld [vmem:[%s352] sm:$0xff]
    %v354 = vld [vmem:[%s352 + $0x8] sm:$0xff]
    %v355 = vld [vmem:[%s352 + $0x10] sm:$0xff]
    %v356 = vld [vmem:[%s352 + $0x18] sm:$0xff]
    %v357 = vld [vmem:[%s352 + $0x20] sm:$0xff]
    %v358 = vld [vmem:[%s352 + $0x28] sm:$0xff]
    %v359 = vld [vmem:[%s352 + $0x30] sm:$0xff]
    %v360 = vld [vmem:[%s352 + $0x38] sm:$0xff]
    %v361 = vld [vmem:[%s352 + $0x40] sm:$0xff]
    %v362 = vld [vmem:[%s352 + $0x48] sm:$0xff]
    %v363 = vld [vmem:[%s352 + $0x50] sm:$0xff]
    %v364 = vld [vmem:[%s352 + $0x58] sm:$0xff]
    %v365 = vld [vmem:[%s352 + $0x60] sm:$0xff]
    %v366 = vld [vmem:[%s352 + $0x68] sm:$0xff]
    %v367 = vld [vmem:[%s352 + $0x70] sm:$0xff]
    %v368 = vld [vmem:[%s352 + $0x78] sm:$0xff]
    %s369 = scalar_lea.vmem %s2, 2
    %v370 = vld [vmem:[%s369] sm:$0x1]
    %v372 = vlaneseq
    %v373 = vshrl.u32 %v372, 7
    %v374 = vsub.s32 0, %v373
    %v375 = vrot.slane %v370, %v374
    %377 = vmatprep.subr.mxu0 0.0
    %378 = vmatpush1.msra.mxu0 %v353
    %379 = vmatprep.subr.mxu0 0.0
    %380 = vmatpush1.msra.mxu0 %v354
    %381 = vmatprep.subr.mxu0 0.0
    %382 = vmatpush1.msra.mxu0 %v355
    %383 = vmatprep.subr.mxu0 0.0
    %384 = vmatpush1.msra.mxu0 %v356
    %385 = vmatprep.subr.mxu0 0.0
    %386 = vmatpush1.msra.mxu0 %v357
    %387 = vmatprep.subr.mxu0 0.0
    %388 = vmatpush1.msra.mxu0 %v358
    %389 = vmatprep.subr.mxu0 0.0
    %390 = vmatpush1.msra.mxu0 %v359
    %391 = vmatprep.subr.mxu0 0.0
    %392 = vmatpush1.msra.mxu0 %v360
    %393 = vmatprep.subr.mxu0 0.0
    %394 = vmatpush1.msra.mxu0 %v361
    %395 = vmatprep.subr.mxu0 0.0
    %396 = vmatpush1.msra.mxu0 %v362
    %397 = vmatprep.subr.mxu0 0.0
    %398 = vmatpush1.msra.mxu0 %v363
    %399 = vmatprep.subr.mxu0 0.0
    %400 = vmatpush1.msra.mxu0 %v364
    %401 = vmatprep.subr.mxu0 0.0
    %402 = vmatpush1.msra.mxu0 %v365
    %403 = vmatprep.subr.mxu0 0.0
    %404 = vmatpush1.msra.mxu0 %v366
    %405 = vmatprep.subr.mxu0 0.0
    %406 = vmatpush1.msra.mxu0 %v367
    %407 = vmatprep.subr.mxu0 0.0
    %408 = vmatpush1.msra.mxu0 %v368
    %409 = vmatprep.subr.mxu0 0.0
    %410 = vmatpush1.msra.mxu0 0.0
    %411 = vmatprep.subr.mxu0 0.0
    %412 = vmatpush1.msra.mxu0 0.0
    %413 = vmatprep.subr.mxu0 0.0
    %414 = vmatpush1.msra.mxu0 0.0
    %415 = vmatprep.subr.mxu0 0.0
    %416 = vmatpush1.msra.mxu0 0.0
    %417 = vmatprep.subr.mxu0 0.0
    %418 = vmatpush1.msra.mxu0 0.0
    %419 = vmatprep.subr.mxu0 0.0
    %420 = vmatpush1.msra.mxu0 0.0
    %421 = vmatprep.subr.mxu0 0.0
    %422 = vmatpush1.msra.mxu0 0.0
    %423 = vmatprep.subr.mxu0 0.0
    %424 = vmatpush1.msra.mxu0 0.0
    %425 = vmatprep.subr.mxu0 0.0
    %426 = vmatpush1.msra.mxu0 0.0
    %427 = vmatprep.subr.mxu0 0.0
    %428 = vmatpush1.msra.mxu0 0.0
    %429 = vmatprep.subr.mxu0 0.0
    %430 = vmatpush1.msra.mxu0 0.0
    %431 = vmatprep.subr.mxu0 0.0
    %432 = vmatpush1.msra.mxu0 0.0
    %433 = vmatprep.subr.mxu0 0.0
    %434 = vmatpush1.msra.mxu0 0.0
    %435 = vmatprep.subr.mxu0 0.0
    %436 = vmatpush1.msra.mxu0 0.0
    %437 = vmatprep.subr.mxu0 0.0
    %438 = vmatpush1.msra.mxu0 0.0
    %439 = vmatprep.subr.mxu0 0.0
    %440 = vmatpush1.msra.mxu0 0.0
    %441 = vmatprep.mubr.f32.mxu0 0.0
    %442 = vmatmul.mubr.f32.gmra.mrb[0].mxu0 %v344
    %v443 = vpop.f32.mrb[0].mxu0
    %v444 = vadd.f32 %v375, %v443
    %v445 = vpop.f32.mrb[0].mxu0
    %446 = vmatprep.mubr.f32.mxu0 0.0
    %447 = vmatmul.mubr.f32.gmra.mrb[0].mxu0 %v345
    %v448 = vpop.f32.mrb[0].mxu0
    %v449 = vadd.f32 %v375, %v448
    %v450 = vpop.f32.mrb[0].mxu0
    %451 = vmatprep.mubr.f32.mxu0 0.0
    %452 = vmatmul.mubr.f32.gmra.mrb[0].mxu0 %v346
    %v453 = vpop.f32.mrb[0].mxu0
    %v454 = vadd.f32 %v375, %v453
    %v455 = vpop.f32.mrb[0].mxu0
    %456 = vmatprep.mubr.f32.mxu0 0.0
    %457 = vmatmul.mubr.f32.gmra.mrb[0].mxu0 %v347
    %v458 = vpop.f32.mrb[0].mxu0
    %v459 = vadd.f32 %v375, %v458
    %v460 = vpop.f32.mrb[0].mxu0
    %461 = vmatprep.mubr.f32.mxu0 0.0
    %462 = vmatmul.mubr.f32.gmra.mrb[0].mxu0 %v348
    %v463 = vpop.f32.mrb[0].mxu0
    %v464 = vadd.f32 %v375, %v463
    %v465 = vpop.f32.mrb[0].mxu0
    %466 = vmatprep.mubr.f32.mxu0 0.0
    %467 = vmatmul.mubr.f32.gmra.mrb[0].mxu0 %v349
    %v468 = vpop.f32.mrb[0].mxu0
    %v469 = vadd.f32 %v375, %v468
    %v470 = vpop.f32.mrb[0].mxu0
    %471 = vmatprep.mubr.f32.mxu0 0.0
    %472 = vmatmul.mubr.f32.gmra.mrb[0].mxu0 %v350
    %v473 = vpop.f32.mrb[0].mxu0
    %v474 = vadd.f32 %v375, %v473
    %v475 = vpop.f32.mrb[0].mxu0
    %476 = vmatprep.mubr.f32.mxu0 0.0
    %477 = vmatmul.mubr.f32.gmra.mrb[0].mxu0 %v351
    %v478 = vpop.f32.mrb[0].mxu0
    %v479 = vadd.f32 %v375, %v478
    %v480 = vpop.f32.mrb[0].mxu0
    %481 = vdwg.mxu0
    %v482 = vmul.f32 %v444, 0.2
    %v483 = vmul.f32 %v449, 0.2
    %v484 = vmul.f32 %v454, 0.2
    %v485 = vmul.f32 %v459, 0.2
    %v486 = vmul.f32 %v464, 0.2
    %v487 = vmul.f32 %v469, 0.2
    %v488 = vmul.f32 %v474, 0.2
    %v489 = vmul.f32 %v479, 0.2
    %v490 = vmax.f32 %v444, %v482
    %v491 = vmax.f32 %v449, %v483
    %v492 = vmax.f32 %v454, %v484
    %v493 = vmax.f32 %v459, %v485
    %v494 = vmax.f32 %v464, %v486
    %v495 = vmax.f32 %v469, %v487
    %v496 = vmax.f32 %v474, %v488
    %v497 = vmax.f32 %v479, %v489
    %s498 = scalar_lea.vmem [#allocation3], 384
    %v499 = vld [vmem:[%s498] sm:$0xff]
    %v500 = vld [vmem:[%s498 + $0x8] sm:$0xff]
    %v501 = vld [vmem:[%s498 + $0x10] sm:$0xff]
    %v502 = vld [vmem:[%s498 + $0x18] sm:$0xff]
    %v503 = vld [vmem:[%s498 + $0x20] sm:$0xff]
    %v504 = vld [vmem:[%s498 + $0x28] sm:$0xff]
    %v505 = vld [vmem:[%s498 + $0x30] sm:$0xff]
    %v506 = vld [vmem:[%s498 + $0x38] sm:$0xff]
    %v507 = vld [vmem:[%s498 + $0x40] sm:$0xff]
    %v508 = vld [vmem:[%s498 + $0x48] sm:$0xff]
    %v509 = vld [vmem:[%s498 + $0x50] sm:$0xff]
    %v510 = vld [vmem:[%s498 + $0x58] sm:$0xff]
    %v511 = vld [vmem:[%s498 + $0x60] sm:$0xff]
    %v512 = vld [vmem:[%s498 + $0x68] sm:$0xff]
    %v513 = vld [vmem:[%s498 + $0x70] sm:$0xff]
    %v514 = vld [vmem:[%s498 + $0x78] sm:$0xff]
    %s515 = scalar_lea.vmem %s2, 3
    %v516 = vld [vmem:[%s515] sm:$0x1]
    %v518 = vlaneseq
    %v519 = vshrl.u32 %v518, 7
    %v520 = vsub.s32 0, %v519
    %v521 = vrot.slane %v516, %v520
    %523 = vmatprep.subr.mxu0 0.0
    %524 = vmatpush1.msra.mxu0 %v499
    %525 = vmatprep.subr.mxu0 0.0
    %526 = vmatpush1.msra.mxu0 %v500
    %527 = vmatprep.subr.mxu0 0.0
    %528 = vmatpush1.msra.mxu0 %v501
    %529 = vmatprep.subr.mxu0 0.0
    %530 = vmatpush1.msra.mxu0 %v502
    %531 = vmatprep.subr.mxu0 0.0
    %532 = vmatpush1.msra.mxu0 %v503
    %533 = vmatprep.subr.mxu0 0.0
    %534 = vmatpush1.msra.mxu0 %v504
    %535 = vmatprep.subr.mxu0 0.0
    %536 = vmatpush1.msra.mxu0 %v505
    %537 = vmatprep.subr.mxu0 0.0
    %538 = vmatpush1.msra.mxu0 %v506
    %539 = vmatprep.subr.mxu0 0.0
    %540 = vmatpush1.msra.mxu0 %v507
    %541 = vmatprep.subr.mxu0 0.0
    %542 = vmatpush1.msra.mxu0 %v508
    %543 = vmatprep.subr.mxu0 0.0
    %544 = vmatpush1.msra.mxu0 %v509
    %545 = vmatprep.subr.mxu0 0.0
    %546 = vmatpush1.msra.mxu0 %v510
    %547 = vmatprep.subr.mxu0 0.0
    %548 = vmatpush1.msra.mxu0 %v511
    %549 = vmatprep.subr.mxu0 0.0
    %550 = vmatpush1.msra.mxu0 %v512
    %551 = vmatprep.subr.mxu0 0.0
    %552 = vmatpush1.msra.mxu0 %v513
    %553 = vmatprep.subr.mxu0 0.0
    %554 = vmatpush1.msra.mxu0 %v514
    %555 = vmatprep.subr.mxu0 0.0
    %556 = vmatpush1.msra.mxu0 0.0
    %557 = vmatprep.subr.mxu0 0.0
    %558 = vmatpush1.msra.mxu0 0.0
    %559 = vmatprep.subr.mxu0 0.0
    %560 = vmatpush1.msra.mxu0 0.0
    %561 = vmatprep.subr.mxu0 0.0
    %562 = vmatpush1.msra.mxu0 0.0
    %563 = vmatprep.subr.mxu0 0.0
    %564 = vmatpush1.msra.mxu0 0.0
    %565 = vmatprep.subr.mxu0 0.0
    %566 = vmatpush1.msra.mxu0 0.0
    %567 = vmatprep.subr.mxu0 0.0
    %568 = vmatpush1.msra.mxu0 0.0
    %569 = vmatprep.subr.mxu0 0.0
    %570 = vmatpush1.msra.mxu0 0.0
    %571 = vmatprep.subr.mxu0 0.0
    %572 = vmatpush1.msra.mxu0 0.0
    %573 = vmatprep.subr.mxu0 0.0
    %574 = vmatpush1.msra.mxu0 0.0
    %575 = vmatprep.subr.mxu0 0.0
    %576 = vmatpush1.msra.mxu0 0.0
    %577 = vmatprep.subr.mxu0 0.0
    %578 = vmatpush1.msra.mxu0 0.0
    %579 = vmatprep.subr.mxu0 0.0
    %580 = vmatpush1.msra.mxu0 0.0
    %581 = vmatprep.subr.mxu0 0.0
    %582 = vmatpush1.msra.mxu0 0.0
    %583 = vmatprep.subr.mxu0 0.0
    %584 = vmatpush1.msra.mxu0 0.0
    %585 = vmatprep.subr.mxu0 0.0
    %586 = vmatpush1.msra.mxu0 0.0
    %587 = vmatprep.mubr.f32.mxu0 0.0
    %588 = vmatmul.mubr.f32.gmra.mrb[0].mxu0 %v490
    %v589 = vpop.f32.mrb[0].mxu0
    %v590 = vadd.f32 %v521, %v589
    %v591 = vpop.f32.mrb[0].mxu0
    %592 = vmatprep.mubr.f32.mxu0 0.0
    %593 = vmatmul.mubr.f32.gmra.mrb[0].mxu0 %v491
    %v594 = vpop.f32.mrb[0].mxu0
    %v595 = vadd.f32 %v521, %v594
    %v596 = vpop.f32.mrb[0].mxu0
    %597 = vmatprep.mubr.f32.mxu0 0.0
    %598 = vmatmul.mubr.f32.gmra.mrb[0].mxu0 %v492
    %v599 = vpop.f32.mrb[0].mxu0
    %v600 = vadd.f32 %v521, %v599
    %v601 = vpop.f32.mrb[0].mxu0
    %602 = vmatprep.mubr.f32.mxu0 0.0
    %603 = vmatmul.mubr.f32.gmra.mrb[0].mxu0 %v493
    %v604 = vpop.f32.mrb[0].mxu0
    %v605 = vadd.f32 %v521, %v604
    %v606 = vpop.f32.mrb[0].mxu0
    %607 = vmatprep.mubr.f32.mxu0 0.0
    %608 = vmatmul.mubr.f32.gmra.mrb[0].mxu0 %v494
    %v609 = vpop.f32.mrb[0].mxu0
    %v610 = vadd.f32 %v521, %v609
    %v611 = vpop.f32.mrb[0].mxu0
    %612 = vmatprep.mubr.f32.mxu0 0.0
    %613 = vmatmul.mubr.f32.gmra.mrb[0].mxu0 %v495
    %v614 = vpop.f32.mrb[0].mxu0
    %v615 = vadd.f32 %v521, %v614
    %v616 = vpop.f32.mrb[0].mxu0
    %617 = vmatprep.mubr.f32.mxu0 0.0
    %618 = vmatmul.mubr.f32.gmra.mrb[0].mxu0 %v496
    %v619 = vpop.f32.mrb[0].mxu0
    %v620 = vadd.f32 %v521, %v619
    %v621 = vpop.f32.mrb[0].mxu0
    %622 = vmatprep.mubr.f32.mxu0 0.0
    %623 = vmatmul.mubr.f32.gmra.mrb[0].mxu0 %v497
    %v624 = vpop.f32.mrb[0].mxu0
    %v625 = vadd.f32 %v521, %v624
    %v626 = vpop.f32.mrb[0].mxu0
    %627 = vdwg.mxu0
    %v628 = vmul.f32 %v590, 0.2
    %v629 = vmul.f32 %v595, 0.2
    %v630 = vmul.f32 %v600, 0.2
    %v631 = vmul.f32 %v605, 0.2
    %v632 = vmul.f32 %v610, 0.2
    %v633 = vmul.f32 %v615, 0.2
    %v634 = vmul.f32 %v620, 0.2
    %v635 = vmul.f32 %v625, 0.2
    %v636 = vmax.f32 %v590, %v628
    %v637 = vmax.f32 %v595, %v629
    %v638 = vmax.f32 %v600, %v630
    %v639 = vmax.f32 %v605, %v631
    %v640 = vmax.f32 %v610, %v632
    %v641 = vmax.f32 %v615, %v633
    %v642 = vmax.f32 %v620, %v634
    %v643 = vmax.f32 %v625, %v635
    %s644 = scalar_lea.vmem [#allocation3], 512
    %v645 = vld [vmem:[%s644] sm:$0xff]
    %v646 = vld [vmem:[%s644 + $0x8] sm:$0xff]
    %v647 = vld [vmem:[%s644 + $0x10] sm:$0xff]
    %v648 = vld [vmem:[%s644 + $0x18] sm:$0xff]
    %v649 = vld [vmem:[%s644 + $0x20] sm:$0xff]
    %v650 = vld [vmem:[%s644 + $0x28] sm:$0xff]
    %v651 = vld [vmem:[%s644 + $0x30] sm:$0xff]
    %v652 = vld [vmem:[%s644 + $0x38] sm:$0xff]
    %v653 = vld [vmem:[%s644 + $0x40] sm:$0xff]
    %v654 = vld [vmem:[%s644 + $0x48] sm:$0xff]
    %v655 = vld [vmem:[%s644 + $0x50] sm:$0xff]
    %v656 = vld [vmem:[%s644 + $0x58] sm:$0xff]
    %v657 = vld [vmem:[%s644 + $0x60] sm:$0xff]
    %v658 = vld [vmem:[%s644 + $0x68] sm:$0xff]
    %v659 = vld [vmem:[%s644 + $0x70] sm:$0xff]
    %v660 = vld [vmem:[%s644 + $0x78] sm:$0xff]
    %s661 = scalar_lea.vmem %s2, 4
    %v662 = vld [vmem:[%s661] sm:$0x1]
    %v664 = vlaneseq
    %v665 = vshrl.u32 %v664, 7
    %v666 = vsub.s32 0, %v665
    %v667 = vrot.slane %v662, %v666
    %669 = vmatprep.subr.mxu0 0.0
    %670 = vmatpush1.msra.mxu0 %v645
    %671 = vmatprep.subr.mxu0 0.0
    %672 = vmatpush1.msra.mxu0 %v646
    %673 = vmatprep.subr.mxu0 0.0
    %674 = vmatpush1.msra.mxu0 %v647
    %675 = vmatprep.subr.mxu0 0.0
    %676 = vmatpush1.msra.mxu0 %v648
    %677 = vmatprep.subr.mxu0 0.0
    %678 = vmatpush1.msra.mxu0 %v649
    %679 = vmatprep.subr.mxu0 0.0
    %680 = vmatpush1.msra.mxu0 %v650
    %681 = vmatprep.subr.mxu0 0.0
    %682 = vmatpush1.msra.mxu0 %v651
    %683 = vmatprep.subr.mxu0 0.0
    %684 = vmatpush1.msra.mxu0 %v652
    %685 = vmatprep.subr.mxu0 0.0
    %686 = vmatpush1.msra.mxu0 %v653
    %687 = vmatprep.subr.mxu0 0.0
    %688 = vmatpush1.msra.mxu0 %v654
    %689 = vmatprep.subr.mxu0 0.0
    %690 = vmatpush1.msra.mxu0 %v655
    %691 = vmatprep.subr.mxu0 0.0
    %692 = vmatpush1.msra.mxu0 %v656
    %693 = vmatprep.subr.mxu0 0.0
    %694 = vmatpush1.msra.mxu0 %v657
    %695 = vmatprep.subr.mxu0 0.0
    %696 = vmatpush1.msra.mxu0 %v658
    %697 = vmatprep.subr.mxu0 0.0
    %698 = vmatpush1.msra.mxu0 %v659
    %699 = vmatprep.subr.mxu0 0.0
    %700 = vmatpush1.msra.mxu0 %v660
    %701 = vmatprep.subr.mxu0 0.0
    %702 = vmatpush1.msra.mxu0 0.0
    %703 = vmatprep.subr.mxu0 0.0
    %704 = vmatpush1.msra.mxu0 0.0
    %705 = vmatprep.subr.mxu0 0.0
    %706 = vmatpush1.msra.mxu0 0.0
    %707 = vmatprep.subr.mxu0 0.0
    %708 = vmatpush1.msra.mxu0 0.0
    %709 = vmatprep.subr.mxu0 0.0
    %710 = vmatpush1.msra.mxu0 0.0
    %711 = vmatprep.subr.mxu0 0.0
    %712 = vmatpush1.msra.mxu0 0.0
    %713 = vmatprep.subr.mxu0 0.0
    %714 = vmatpush1.msra.mxu0 0.0
    %715 = vmatprep.subr.mxu0 0.0
    %716 = vmatpush1.msra.mxu0 0.0
    %717 = vmatprep.subr.mxu0 0.0
    %718 = vmatpush1.msra.mxu0 0.0
    %719 = vmatprep.subr.mxu0 0.0
    %720 = vmatpush1.msra.mxu0 0.0
    %721 = vmatprep.subr.mxu0 0.0
    %722 = vmatpush1.msra.mxu0 0.0
    %723 = vmatprep.subr.mxu0 0.0
    %724 = vmatpush1.msra.mxu0 0.0
    %725 = vmatprep.subr.mxu0 0.0
    %726 = vmatpush1.msra.mxu0 0.0
    %727 = vmatprep.subr.mxu0 0.0
    %728 = vmatpush1.msra.mxu0 0.0
    %729 = vmatprep.subr.mxu0 0.0
    %730 = vmatpush1.msra.mxu0 0.0
    %731 = vmatprep.subr.mxu0 0.0
    %732 = vmatpush1.msra.mxu0 0.0
    %733 = vmatprep.mubr.f32.mxu0 0.0
    %734 = vmatmul.mubr.f32.gmra.mrb[0].mxu0 %v636
    %v735 = vpop.f32.mrb[0].mxu0
    %v736 = vadd.f32 %v667, %v735
    %v737 = vpop.f32.mrb[0].mxu0
    %738 = vmatprep.mubr.f32.mxu0 0.0
    %739 = vmatmul.mubr.f32.gmra.mrb[0].mxu0 %v637
    %v740 = vpop.f32.mrb[0].mxu0
    %v741 = vadd.f32 %v667, %v740
    %v742 = vpop.f32.mrb[0].mxu0
    %743 = vmatprep.mubr.f32.mxu0 0.0
    %744 = vmatmul.mubr.f32.gmra.mrb[0].mxu0 %v638
    %v745 = vpop.f32.mrb[0].mxu0
    %v746 = vadd.f32 %v667, %v745
    %v747 = vpop.f32.mrb[0].mxu0
    %748 = vmatprep.mubr.f32.mxu0 0.0
    %749 = vmatmul.mubr.f32.gmra.mrb[0].mxu0 %v639
    %v750 = vpop.f32.mrb[0].mxu0
    %v751 = vadd.f32 %v667, %v750
    %v752 = vpop.f32.mrb[0].mxu0
    %753 = vmatprep.mubr.f32.mxu0 0.0
    %754 = vmatmul.mubr.f32.gmra.mrb[0].mxu0 %v640
    %v755 = vpop.f32.mrb[0].mxu0
    %v756 = vadd.f32 %v667, %v755
    %v757 = vpop.f32.mrb[0].mxu0
    %758 = vmatprep.mubr.f32.mxu0 0.0
    %759 = vmatmul.mubr.f32.gmra.mrb[0].mxu0 %v641
    %v760 = vpop.f32.mrb[0].mxu0
    %v761 = vadd.f32 %v667, %v760
    %v762 = vpop.f32.mrb[0].mxu0
    %763 = vmatprep.mubr.f32.mxu0 0.0
    %764 = vmatmul.mubr.f32.gmra.mrb[0].mxu0 %v642
    %v765 = vpop.f32.mrb[0].mxu0
    %v766 = vadd.f32 %v667, %v765
    %v767 = vpop.f32.mrb[0].mxu0
    %768 = vmatprep.mubr.f32.mxu0 0.0
    %769 = vmatmul.mubr.f32.gmra.mrb[0].mxu0 %v643
    %v770 = vpop.f32.mrb[0].mxu0
    %v771 = vadd.f32 %v667, %v770
    %v772 = vpop.f32.mrb[0].mxu0
    %773 = vdwg.mxu0
    %v774 = vmul.f32 %v736, 0.2
    %v775 = vmul.f32 %v741, 0.2
    %v776 = vmul.f32 %v746, 0.2
    %v777 = vmul.f32 %v751, 0.2
    %v778 = vmul.f32 %v756, 0.2
    %v779 = vmul.f32 %v761, 0.2
    %v780 = vmul.f32 %v766, 0.2
    %v781 = vmul.f32 %v771, 0.2
    %v782 = vmax.f32 %v736, %v774
    %v783 = vmax.f32 %v741, %v775
    %v784 = vmax.f32 %v746, %v776
    %v785 = vmax.f32 %v751, %v777
    %v786 = vmax.f32 %v756, %v778
    %v787 = vmax.f32 %v761, %v779
    %v788 = vmax.f32 %v766, %v780
    %v789 = vmax.f32 %v771, %v781
    %s790 = scalar_lea.vmem [#allocation3], 640
    %v791 = vld [vmem:[%s790] sm:$0xff]
    %v792 = vld [vmem:[%s790 + $0x8] sm:$0xff]
    %v793 = vld [vmem:[%s790 + $0x10] sm:$0xff]
    %v794 = vld [vmem:[%s790 + $0x18] sm:$0xff]
    %v795 = vld [vmem:[%s790 + $0x20] sm:$0xff]
    %v796 = vld [vmem:[%s790 + $0x28] sm:$0xff]
    %v797 = vld [vmem:[%s790 + $0x30] sm:$0xff]
    %v798 = vld [vmem:[%s790 + $0x38] sm:$0xff]
    %v799 = vld [vmem:[%s790 + $0x40] sm:$0xff]
    %v800 = vld [vmem:[%s790 + $0x48] sm:$0xff]
    %v801 = vld [vmem:[%s790 + $0x50] sm:$0xff]
    %v802 = vld [vmem:[%s790 + $0x58] sm:$0xff]
    %v803 = vld [vmem:[%s790 + $0x60] sm:$0xff]
    %v804 = vld [vmem:[%s790 + $0x68] sm:$0xff]
    %v805 = vld [vmem:[%s790 + $0x70] sm:$0xff]
    %v806 = vld [vmem:[%s790 + $0x78] sm:$0xff]
    %s807 = scalar_lea.vmem %s2, 5
    %v808 = vld [vmem:[%s807] sm:$0x1]
    %v810 = vlaneseq
    %v811 = vshrl.u32 %v810, 7
    %v812 = vsub.s32 0, %v811
    %v813 = vrot.slane %v808, %v812
    %815 = vmatprep.subr.mxu0 0.0
    %816 = vmatpush1.msra.mxu0 %v791
    %817 = vmatprep.subr.mxu0 0.0
    %818 = vmatpush1.msra.mxu0 %v792
    %819 = vmatprep.subr.mxu0 0.0
    %820 = vmatpush1.msra.mxu0 %v793
    %821 = vmatprep.subr.mxu0 0.0
    %822 = vmatpush1.msra.mxu0 %v794
    %823 = vmatprep.subr.mxu0 0.0
    %824 = vmatpush1.msra.mxu0 %v795
    %825 = vmatprep.subr.mxu0 0.0
    %826 = vmatpush1.msra.mxu0 %v796
    %827 = vmatprep.subr.mxu0 0.0
    %828 = vmatpush1.msra.mxu0 %v797
    %829 = vmatprep.subr.mxu0 0.0
    %830 = vmatpush1.msra.mxu0 %v798
    %831 = vmatprep.subr.mxu0 0.0
    %832 = vmatpush1.msra.mxu0 %v799
    %833 = vmatprep.subr.mxu0 0.0
    %834 = vmatpush1.msra.mxu0 %v800
    %835 = vmatprep.subr.mxu0 0.0
    %836 = vmatpush1.msra.mxu0 %v801
    %837 = vmatprep.subr.mxu0 0.0
    %838 = vmatpush1.msra.mxu0 %v802
    %839 = vmatprep.subr.mxu0 0.0
    %840 = vmatpush1.msra.mxu0 %v803
    %841 = vmatprep.subr.mxu0 0.0
    %842 = vmatpush1.msra.mxu0 %v804
    %843 = vmatprep.subr.mxu0 0.0
    %844 = vmatpush1.msra.mxu0 %v805
    %845 = vmatprep.subr.mxu0 0.0
    %846 = vmatpush1.msra.mxu0 %v806
    %847 = vmatprep.subr.mxu0 0.0
    %848 = vmatpush1.msra.mxu0 0.0
    %849 = vmatprep.subr.mxu0 0.0
    %850 = vmatpush1.msra.mxu0 0.0
    %851 = vmatprep.subr.mxu0 0.0
    %852 = vmatpush1.msra.mxu0 0.0
    %853 = vmatprep.subr.mxu0 0.0
    %854 = vmatpush1.msra.mxu0 0.0
    %855 = vmatprep.subr.mxu0 0.0
    %856 = vmatpush1.msra.mxu0 0.0
    %857 = vmatprep.subr.mxu0 0.0
    %858 = vmatpush1.msra.mxu0 0.0
    %859 = vmatprep.subr.mxu0 0.0
    %860 = vmatpush1.msra.mxu0 0.0
    %861 = vmatprep.subr.mxu0 0.0
    %862 = vmatpush1.msra.mxu0 0.0
    %863 = vmatprep.subr.mxu0 0.0
    %864 = vmatpush1.msra.mxu0 0.0
    %865 = vmatprep.subr.mxu0 0.0
    %866 = vmatpush1.msra.mxu0 0.0
    %867 = vmatprep.subr.mxu0 0.0
    %868 = vmatpush1.msra.mxu0 0.0
    %869 = vmatprep.subr.mxu0 0.0
    %870 = vmatpush1.msra.mxu0 0.0
    %871 = vmatprep.subr.mxu0 0.0
    %872 = vmatpush1.msra.mxu0 0.0
    %873 = vmatprep.subr.mxu0 0.0
    %874 = vmatpush1.msra.mxu0 0.0
    %875 = vmatprep.subr.mxu0 0.0
    %876 = vmatpush1.msra.mxu0 0.0
    %877 = vmatprep.subr.mxu0 0.0
    %878 = vmatpush1.msra.mxu0 0.0
    %879 = vmatprep.mubr.f32.mxu0 0.0
    %880 = vmatmul.mubr.f32.gmra.mrb[0].mxu0 %v782
    %v881 = vpop.f32.mrb[0].mxu0
    %v882 = vadd.f32 %v813, %v881
    %v883 = vpop.f32.mrb[0].mxu0
    %884 = vmatprep.mubr.f32.mxu0 0.0
    %885 = vmatmul.mubr.f32.gmra.mrb[0].mxu0 %v783
    %v886 = vpop.f32.mrb[0].mxu0
    %v887 = vadd.f32 %v813, %v886
    %v888 = vpop.f32.mrb[0].mxu0
    %889 = vmatprep.mubr.f32.mxu0 0.0
    %890 = vmatmul.mubr.f32.gmra.mrb[0].mxu0 %v784
    %v891 = vpop.f32.mrb[0].mxu0
    %v892 = vadd.f32 %v813, %v891
    %v893 = vpop.f32.mrb[0].mxu0
    %894 = vmatprep.mubr.f32.mxu0 0.0
    %895 = vmatmul.mubr.f32.gmra.mrb[0].mxu0 %v785
    %v896 = vpop.f32.mrb[0].mxu0
    %v897 = vadd.f32 %v813, %v896
    %v898 = vpop.f32.mrb[0].mxu0
    %899 = vmatprep.mubr.f32.mxu0 0.0
    %900 = vmatmul.mubr.f32.gmra.mrb[0].mxu0 %v786
    %v901 = vpop.f32.mrb[0].mxu0
    %v902 = vadd.f32 %v813, %v901
    %v903 = vpop.f32.mrb[0].mxu0
    %904 = vmatprep.mubr.f32.mxu0 0.0
    %905 = vmatmul.mubr.f32.gmra.mrb[0].mxu0 %v787
    %v906 = vpop.f32.mrb[0].mxu0
    %v907 = vadd.f32 %v813, %v906
    %v908 = vpop.f32.mrb[0].mxu0
    %909 = vmatprep.mubr.f32.mxu0 0.0
    %910 = vmatmul.mubr.f32.gmra.mrb[0].mxu0 %v788
    %v911 = vpop.f32.mrb[0].mxu0
    %v912 = vadd.f32 %v813, %v911
    %v913 = vpop.f32.mrb[0].mxu0
    %914 = vmatprep.mubr.f32.mxu0 0.0
    %915 = vmatmul.mubr.f32.gmra.mrb[0].mxu0 %v789
    %v916 = vpop.f32.mrb[0].mxu0
    %v917 = vadd.f32 %v813, %v916
    %v918 = vpop.f32.mrb[0].mxu0
    %919 = vdwg.mxu0
    %v920 = vmul.f32 %v882, 0.2
    %v921 = vmul.f32 %v887, 0.2
    %v922 = vmul.f32 %v892, 0.2
    %v923 = vmul.f32 %v897, 0.2
    %v924 = vmul.f32 %v902, 0.2
    %v925 = vmul.f32 %v907, 0.2
    %v926 = vmul.f32 %v912, 0.2
    %v927 = vmul.f32 %v917, 0.2
    %v928 = vmax.f32 %v882, %v920
    %v929 = vmax.f32 %v887, %v921
    %v930 = vmax.f32 %v892, %v922
    %v931 = vmax.f32 %v897, %v923
    %v932 = vmax.f32 %v902, %v924
    %v933 = vmax.f32 %v907, %v925
    %v934 = vmax.f32 %v912, %v926
    %v935 = vmax.f32 %v917, %v927
    %s936 = scalar_lea.vmem [#allocation3], 768
    %v937 = vld [vmem:[%s936] sm:$0xff]
    %v938 = vld [vmem:[%s936 + $0x8] sm:$0xff]
    %v939 = vld [vmem:[%s936 + $0x10] sm:$0xff]
    %v940 = vld [vmem:[%s936 + $0x18] sm:$0xff]
    %v941 = vld [vmem:[%s936 + $0x20] sm:$0xff]
    %v942 = vld [vmem:[%s936 + $0x28] sm:$0xff]
    %v943 = vld [vmem:[%s936 + $0x30] sm:$0xff]
    %v944 = vld [vmem:[%s936 + $0x38] sm:$0xff]
    %v945 = vld [vmem:[%s936 + $0x40] sm:$0xff]
    %v946 = vld [vmem:[%s936 + $0x48] sm:$0xff]
    %v947 = vld [vmem:[%s936 + $0x50] sm:$0xff]
    %v948 = vld [vmem:[%s936 + $0x58] sm:$0xff]
    %v949 = vld [vmem:[%s936 + $0x60] sm:$0xff]
    %v950 = vld [vmem:[%s936 + $0x68] sm:$0xff]
    %v951 = vld [vmem:[%s936 + $0x70] sm:$0xff]
    %v952 = vld [vmem:[%s936 + $0x78] sm:$0xff]
    %s953 = scalar_lea.vmem %s2, 6
    %v954 = vld [vmem:[%s953] sm:$0x1]
    %v956 = vlaneseq
    %v957 = vshrl.u32 %v956, 7
    %v958 = vsub.s32 0, %v957
    %v959 = vrot.slane %v954, %v958
    %961 = vmatprep.subr.mxu0 0.0
    %962 = vmatpush1.msra.mxu0 %v937
    %963 = vmatprep.subr.mxu0 0.0
    %964 = vmatpush1.msra.mxu0 %v938
    %965 = vmatprep.subr.mxu0 0.0
    %966 = vmatpush1.msra.mxu0 %v939
    %967 = vmatprep.subr.mxu0 0.0
    %968 = vmatpush1.msra.mxu0 %v940
    %969 = vmatprep.subr.mxu0 0.0
    %970 = vmatpush1.msra.mxu0 %v941
    %971 = vmatprep.subr.mxu0 0.0
    %972 = vmatpush1.msra.mxu0 %v942
    %973 = vmatprep.subr.mxu0 0.0
    %974 = vmatpush1.msra.mxu0 %v943
    %975 = vmatprep.subr.mxu0 0.0
    %976 = vmatpush1.msra.mxu0 %v944
    %977 = vmatprep.subr.mxu0 0.0
    %978 = vmatpush1.msra.mxu0 %v945
    %979 = vmatprep.subr.mxu0 0.0
    %980 = vmatpush1.msra.mxu0 %v946
    %981 = vmatprep.subr.mxu0 0.0
    %982 = vmatpush1.msra.mxu0 %v947
    %983 = vmatprep.subr.mxu0 0.0
    %984 = vmatpush1.msra.mxu0 %v948
    %985 = vmatprep.subr.mxu0 0.0
    %986 = vmatpush1.msra.mxu0 %v949
    %987 = vmatprep.subr.mxu0 0.0
    %988 = vmatpush1.msra.mxu0 %v950
    %989 = vmatprep.subr.mxu0 0.0
    %990 = vmatpush1.msra.mxu0 %v951
    %991 = vmatprep.subr.mxu0 0.0
    %992 = vmatpush1.msra.mxu0 %v952
    %993 = vmatprep.subr.mxu0 0.0
    %994 = vmatpush1.msra.mxu0 0.0
    %995 = vmatprep.subr.mxu0 0.0
    %996 = vmatpush1.msra.mxu0 0.0
    %997 = vmatprep.subr.mxu0 0.0
    %998 = vmatpush1.msra.mxu0 0.0
    %999 = vmatprep.subr.mxu0 0.0
    %1000 = vmatpush1.msra.mxu0 0.0
    %1001 = vmatprep.subr.mxu0 0.0
    %1002 = vmatpush1.msra.mxu0 0.0
    %1003 = vmatprep.subr.mxu0 0.0
    %1004 = vmatpush1.msra.mxu0 0.0
    %1005 = vmatprep.subr.mxu0 0.0
    %1006 = vmatpush1.msra.mxu0 0.0
    %1007 = vmatprep.subr.mxu0 0.0
    %1008 = vmatpush1.msra.mxu0 0.0
    %1009 = vmatprep.subr.mxu0 0.0
    %1010 = vmatpush1.msra.mxu0 0.0
    %1011 = vmatprep.subr.mxu0 0.0
    %1012 = vmatpush1.msra.mxu0 0.0
    %1013 = vmatprep.subr.mxu0 0.0
    %1014 = vmatpush1.msra.mxu0 0.0
    %1015 = vmatprep.subr.mxu0 0.0
    %1016 = vmatpush1.msra.mxu0 0.0
    %1017 = vmatprep.subr.mxu0 0.0
    %1018 = vmatpush1.msra.mxu0 0.0
    %1019 = vmatprep.subr.mxu0 0.0
    %1020 = vmatpush1.msra.mxu0 0.0
    %1021 = vmatprep.subr.mxu0 0.0
    %1022 = vmatpush1.msra.mxu0 0.0
    %1023 = vmatprep.subr.mxu0 0.0
    %1024 = vmatpush1.msra.mxu0 0.0
    %1025 = vmatprep.mubr.f32.mxu0 0.0
    %1026 = vmatmul.mubr.f32.gmra.mrb[0].mxu0 %v928
    %v1027 = vpop.f32.mrb[0].mxu0
    %v1028 = vadd.f32 %v959, %v1027
    %v1029 = vpop.f32.mrb[0].mxu0
    %1030 = vmatprep.mubr.f32.mxu0 0.0
    %1031 = vmatmul.mubr.f32.gmra.mrb[0].mxu0 %v929
    %v1032 = vpop.f32.mrb[0].mxu0
    %v1033 = vadd.f32 %v959, %v1032
    %v1034 = vpop.f32.mrb[0].mxu0
    %1035 = vmatprep.mubr.f32.mxu0 0.0
    %1036 = vmatmul.mubr.f32.gmra.mrb[0].mxu0 %v930
    %v1037 = vpop.f32.mrb[0].mxu0
    %v1038 = vadd.f32 %v959, %v1037
    %v1039 = vpop.f32.mrb[0].mxu0
    %1040 = vmatprep.mubr.f32.mxu0 0.0
    %1041 = vmatmul.mubr.f32.gmra.mrb[0].mxu0 %v931
    %v1042 = vpop.f32.mrb[0].mxu0
    %v1043 = vadd.f32 %v959, %v1042
    %v1044 = vpop.f32.mrb[0].mxu0
    %1045 = vmatprep.mubr.f32.mxu0 0.0
    %1046 = vmatmul.mubr.f32.gmra.mrb[0].mxu0 %v932
    %v1047 = vpop.f32.mrb[0].mxu0
    %v1048 = vadd.f32 %v959, %v1047
    %v1049 = vpop.f32.mrb[0].mxu0
    %1050 = vmatprep.mubr.f32.mxu0 0.0
    %1051 = vmatmul.mubr.f32.gmra.mrb[0].mxu0 %v933
    %v1052 = vpop.f32.mrb[0].mxu0
    %v1053 = vadd.f32 %v959, %v1052
    %v1054 = vpop.f32.mrb[0].mxu0
    %1055 = vmatprep.mubr.f32.mxu0 0.0
    %1056 = vmatmul.mubr.f32.gmra.mrb[0].mxu0 %v934
    %v1057 = vpop.f32.mrb[0].mxu0
    %v1058 = vadd.f32 %v959, %v1057
    %v1059 = vpop.f32.mrb[0].mxu0
    %1060 = vmatprep.mubr.f32.mxu0 0.0
    %1061 = vmatmul.mubr.f32.gmra.mrb[0].mxu0 %v935
    %v1062 = vpop.f32.mrb[0].mxu0
    %v1063 = vadd.f32 %v959, %v1062
    %v1064 = vpop.f32.mrb[0].mxu0
    %1065 = vdwg.mxu0
    %1066 = vst [vmem:[#allocation6] sm:$0xff] %v1028
    %1067 = vst [vmem:[#allocation6 + $0x8] sm:$0xff] %v1033
    %1068 = vst [vmem:[#allocation6 + $0x10] sm:$0xff] %v1038
    %1069 = vst [vmem:[#allocation6 + $0x18] sm:$0xff] %v1043
    %1070 = vst [vmem:[#allocation6 + $0x20] sm:$0xff] %v1048
    %1071 = vst [vmem:[#allocation6 + $0x28] sm:$0xff] %v1053
    %1072 = vst [vmem:[#allocation6 + $0x30] sm:$0xff] %v1058
    %1073 = vst [vmem:[#allocation6 + $0x38] sm:$0xff] %v1063
    // Predicated region
    $region18: #{tpu_custom_call.1} parent=1 // pred_check
      _
    $region19: #{tpu_custom_call.1} parent=1 // pred_check_branch
      %1075 = sbr.rel (0) target = $region21
    $region20: #{tpu_custom_call.1} parent=1 // pred_region
      %s1077 = ssub.s32 1024, 1024
      %1078 = vsyncadd [#allocation5], %s1077
      %s1079 = sshll.u32 [#allocation6], 4
      %s1080 = int_to_ptr.vmem [resolvable:$true] %s1079
      %1085 = dma.vmem_to_hbm [thread:$0]  %s1080, 1024, %s3, [#allocation5], 128, 128, 8
    $region21: #{tpu_custom_call.1} parent=1 // pred_fallthru
      _
    // Predicated region
    $region22: #{tpu_custom_call.1} parent=1 // pred_check
      _
    $region23: #{tpu_custom_call.1} parent=1 // pred_check_branch
      %1087 = sbr.rel (0) target = $region25
    $region24: #{tpu_custom_call.1} parent=1 // pred_region
      %1088 = dma.done [#allocation5], 1024
    $region25: #{tpu_custom_call.1} parent=1 // pred_fallthru
      _
    %1089 = vsyncpa [#allocation4], 1
    %1090 = vsyncpa [#allocation5], 1

</llo_original>
